<compile_context>
chip_gen: v6e
topology: v6e:2x2x1
jax: 0.10.0
libtpu: 0.0.40
codegen_flags: <defaults>
</compile_context>

<pallas_src>
import functools

import jax
import jax.numpy as jnp
from jax.experimental import pallas as pl
from jax.experimental.pallas import tpu as pltpu

LANE = 128      # vreg lane width
SUBLANE = 8     # f32 vreg sublane count


def _round_up(n, m):
    return ((n + m - 1) // m) * m


def _choose_batch_tile(batch):
    """Pick the batch tile.

    Small batches run in one grid step (dispatch/latency bound).  Large batches
    use ~512-row tiles (measured ~85% of HBM roofline vs ~29% at 128-row tiles)
    while guaranteeing >=2 grid steps so the "parallel" axis can shard across
    v7x's two TensorCores, and minimising zero-row padding.
    """
    if batch <= 256:
        return _round_up(batch, SUBLANE)
    n_steps = max(2, pl.cdiv(batch, 512))
    return _round_up(pl.cdiv(batch, n_steps), SUBLANE)


def _fused_mlp_kernel(x_ref, *refs, num_layers):
    """Fused (Linear -> ReLU) x num_layers.  All operands live in VMEM."""
    *param_refs, o_ref = refs
    h = x_ref[...]                                   # f32 activations
    for l in range(num_layers):                      # unrolled at trace time
        w = param_refs[2 * l][...]                   # bf16 (in, out)
        b = param_refs[2 * l + 1][...]               # f32  (1, out)
        # bf16 MXU operands, f32 accumulation; bias + ReLU stay in f32.
        h = jnp.dot(h.astype(jnp.bfloat16), w,
                    preferred_element_type=jnp.float32)
        h = jnp.maximum(h + b, 0.0)
    o_ref[...] = h.astype(o_ref.dtype)


def fused_mlp(x, kernel_params, out_features):
    """Run the whole Linear+ReLU stack as a single Pallas call.

    x:             [batch, in_features] f32 (fed unpadded in the feature dim)
    kernel_params: list of (w bf16 [in, out], b f32 [1, out]); interior feature
                   dims are 128-padded, first-layer K and last-layer N logical.
    out_features:  logical width of the final layer (== last w.shape[1]).
    """
    batch, in_features = x.shape
    num_layers = len(kernel_params)
    assert kernel_params[0][0].shape[0] == in_features
    assert kernel_params[-1][0].shape[1] == out_features

    tb = _choose_batch_tile(batch)
    padded_batch = _round_up(batch, tb)
    grid = (padded_batch // tb,)

    # Batch-only padding (no 4x feature-dim inflation of x); usually a no-op.
    if padded_batch != batch:
        x_in = jnp.zeros((padded_batch, in_features), x.dtype).at[:batch].set(x)
    else:
        x_in = x

    # All weights/biases stay VMEM-resident across grid steps; keep them well
    # under the default scoped VMEM limit (32 MiB on v6e/v7x, 16 MiB on v5e).
    param_bytes = sum(int(w.size) * w.dtype.itemsize + int(b.size) * b.dtype.itemsize
                      for (w, b) in kernel_params)
    if param_bytes > 12 * 1024 * 1024:
        raise ValueError(
            f"HandNet weights ({param_bytes} B) too large for the all-resident "
            "fused kernel; tile the layer loop instead.")

    in_specs = [pl.BlockSpec((tb, in_features), lambda i: (i, 0))]
    flat_params = []
    for (w, b) in kernel_params:
        # Constant index_map -> fetched once, resident across batch-grid steps.
        in_specs.append(pl.BlockSpec(w.shape, lambda i: (0, 0)))
        in_specs.append(pl.BlockSpec(b.shape, lambda i: (0, 0)))
        flat_params.extend([w, b])
    # TODO(synk): mark the resident weight specs pipeline_mode=pl.Buffered(1)
    # once single-buffered constant blocks are needed to fit VMEM.

    flops = 2 * padded_batch * sum(w.shape[0] * w.shape[1]
                                   for (w, _) in kernel_params)
    bytes_accessed = (x_in.size * x_in.dtype.itemsize + param_bytes
                      + padded_batch * out_features * x.dtype.itemsize)

    out = pl.pallas_call(
        functools.partial(_fused_mlp_kernel, num_layers=num_layers),
        out_shape=jax.ShapeDtypeStruct((padded_batch, out_features), x.dtype),
        grid=grid,
        in_specs=in_specs,
        out_specs=pl.BlockSpec((tb, out_features), lambda i: (i, 0)),
        compiler_params=pltpu.CompilerParams(
            dimension_semantics=("parallel",)),       # shards across v7x's 2 TCs
        cost_estimate=pl.CostEstimate(flops=flops, transcendentals=0,
                                      bytes_accessed=bytes_accessed),
    )(x_in, *flat_params)

    return out if padded_batch == batch else out[:batch]


class HandNet:
    """JAX/Pallas port of torchmax/models/fullplayer2.py::HandNet.

    PyTorch builds Sequential(Linear, ReLU, Linear, ReLU, ...) — a ReLU follows
    every Linear layer, including the last one.
    """

    def __init__(self, input_size, layer_sizes, key):
        self.input_size = input_size
        self.layer_sizes = list(layer_sizes)
        self.params = []         # logical f32 params (for reference math)
        self.kernel_params = []  # (bf16 weight, f32 bias) fed to the kernel

        num_layers = len(self.layer_sizes)
        current = input_size
        for idx, layer_size in enumerate(self.layer_sizes):
            key, wk, bk = jax.random.split(key, 3)
            # Deterministic init mimicking nn.Linear's uniform(-1/sqrt(in), 1/sqrt(in)).
            bound = 1.0 / (current ** 0.5)
            w = jax.random.uniform(wk, (current, layer_size), jnp.float32,
                                   minval=-bound, maxval=bound)   # [in, out] == weight.T
            b = jax.random.uniform(bk, (layer_size,), jnp.float32,
                                   minval=-bound, maxval=bound)
            self.params.append((w, b))

            # Interior feature dims padded to 128 lanes; the first layer's K and
            # the last layer's N stay logical (x fed unpadded, output written at
            # logical width).  Zero-padded rows/cols annihilate padded lanes.
            in_dim = current if idx == 0 else _round_up(current, LANE)
            out_dim = layer_size if idx == num_layers - 1 else _round_up(layer_size, LANE)
            w_pad = jnp.zeros((in_dim, out_dim), jnp.float32)
            w_pad = w_pad.at[:current, :layer_size].set(w)
            b_pad = jnp.zeros((1, out_dim), jnp.float32)
            b_pad = b_pad.at[0, :layer_size].set(b)
            self.kernel_params.append((w_pad.astype(jnp.bfloat16), b_pad))

            current = layer_size

    def __call__(self, x):
        return fused_mlp(x, self.kernel_params, self.layer_sizes[-1])


if __name__ == "__main__":
    key = jax.random.PRNGKey(0)
    key, xkey, pkey = jax.random.split(key, 3)

    batch = 8
    input_size = 32
    layer_sizes = [64, 32, 16]

    x = jax.random.normal(xkey, (batch, input_size), jnp.float32)
    net = HandNet(input_size, layer_sizes, pkey)

    out = jax.block_until_ready(net(x))
    assert out.shape == (batch, layer_sizes[-1])

    # Reference with identical numerics (bf16 MXU operands, f32 accumulation).
    ref = x
    for (w, b) in net.params:
        ref = jnp.maximum(
            jnp.dot(ref.astype(jnp.bfloat16), w.astype(jnp.bfloat16),
                    preferred_element_type=jnp.float32) + b, 0.0)
    assert jnp.allclose(out, ref, atol=1e-3, rtol=1e-3), \
        float(jnp.max(jnp.abs(out - ref)))

    print("KERNEL_OK")
</pallas_src>

<mosaic_0001>
module attributes {stable_mosaic.version = 11 : i64} {
  func.func @_fused_mlp_kernel(%arg0: i32, %arg1: memref<8x32xf32, #tpu.memory_space<vmem>>, %arg2: memref<32x128xbf16, #tpu.memory_space<vmem>>, %arg3: memref<1x128xf32, #tpu.memory_space<vmem>>, %arg4: memref<128x128xbf16, #tpu.memory_space<vmem>>, %arg5: memref<1x128xf32, #tpu.memory_space<vmem>>, %arg6: memref<128x16xbf16, #tpu.memory_space<vmem>>, %arg7: memref<1x16xf32, #tpu.memory_space<vmem>>, %arg8: memref<8x16xf32, #tpu.memory_space<vmem>>) attributes {dimension_semantics = [#tpu.dimension_semantics<parallel>], iteration_bounds = array<i64: 1>, scalar_prefetch = 0 : i64, scratch_operands = 0 : i64, tpu.core_type = #tpu.core_type<tc>, window_params = [{transform_indices = @transform_0, window_bounds = array<i64: 8, 32>}, {pipeline_mode = #tpu.pipeline_mode<synchronous>, transform_indices = @transform_1, window_bounds = array<i64: 32, 128>}, {pipeline_mode = #tpu.pipeline_mode<synchronous>, transform_indices = @transform_2, window_bounds = array<i64: 1, 128>}, {pipeline_mode = #tpu.pipeline_mode<synchronous>, transform_indices = @transform_3, window_bounds = array<i64: 128, 128>}, {pipeline_mode = #tpu.pipeline_mode<synchronous>, transform_indices = @transform_4, window_bounds = array<i64: 1, 128>}, {pipeline_mode = #tpu.pipeline_mode<synchronous>, transform_indices = @transform_5, window_bounds = array<i64: 128, 16>}, {pipeline_mode = #tpu.pipeline_mode<synchronous>, transform_indices = @transform_6, window_bounds = array<i64: 1, 16>}, {transform_indices = @transform_7, window_bounds = array<i64: 8, 16>}]} {
    %c0 = arith.constant 0 : index
    %c0_0 = arith.constant 0 : index
    %0 = vector.load %arg1[%c0, %c0_0] : memref<8x32xf32, #tpu.memory_space<vmem>>, vector<8x32xf32>
    %c0_1 = arith.constant 0 : index
    %c0_2 = arith.constant 0 : index
    %1 = vector.load %arg2[%c0_1, %c0_2] : memref<32x128xbf16, #tpu.memory_space<vmem>>, vector<32x128xbf16>
    %c0_3 = arith.constant 0 : index
    %c0_4 = arith.constant 0 : index
    %2 = vector.load %arg3[%c0_3, %c0_4] : memref<1x128xf32, #tpu.memory_space<vmem>>, vector<1x128xf32>
    %3 = arith.truncf %0 : vector<8x32xf32> to vector<8x32xbf16>
    %cst = arith.constant dense<0.000000e+00> : vector<8x128xf32>
    %4 = tpu.matmul %3, %1, %cst {dimension_numbers = #tpu.dot_dimension_numbers<[1], [0], [0], [1], [0, 0, 1, 1], [], []>} : vector<8x32xbf16>, vector<32x128xbf16>, vector<8x128xf32> -> vector<8x128xf32>
    %5 = vector.broadcast %2 : vector<1x128xf32> to vector<8x128xf32>
    %6 = arith.addf %4, %5 : vector<8x128xf32>
    %cst_5 = arith.constant 0.000000e+00 : f32
    %7 = vector.broadcast %cst_5 : f32 to vector<8x128xf32>
    %8 = arith.maximumf %6, %7 : vector<8x128xf32>
    %c0_6 = arith.constant 0 : index
    %c0_7 = arith.constant 0 : index
    %9 = vector.load %arg4[%c0_6, %c0_7] : memref<128x128xbf16, #tpu.memory_space<vmem>>, vector<128x128xbf16>
    %c0_8 = arith.constant 0 : index
    %c0_9 = arith.constant 0 : index
    %10 = vector.load %arg5[%c0_8, %c0_9] : memref<1x128xf32, #tpu.memory_space<vmem>>, vector<1x128xf32>
    %11 = arith.truncf %8 : vector<8x128xf32> to vector<8x128xbf16>
    %cst_10 = arith.constant dense<0.000000e+00> : vector<8x128xf32>
    %12 = tpu.matmul %11, %9, %cst_10 {dimension_numbers = #tpu.dot_dimension_numbers<[1], [0], [0], [1], [0, 0, 1, 1], [], []>} : vector<8x128xbf16>, vector<128x128xbf16>, vector<8x128xf32> -> vector<8x128xf32>
    %13 = vector.broadcast %10 : vector<1x128xf32> to vector<8x128xf32>
    %14 = arith.addf %12, %13 : vector<8x128xf32>
    %cst_11 = arith.constant 0.000000e+00 : f32
    %15 = vector.broadcast %cst_11 : f32 to vector<8x128xf32>
    %16 = arith.maximumf %14, %15 : vector<8x128xf32>
    %c0_12 = arith.constant 0 : index
    %c0_13 = arith.constant 0 : index
    %17 = vector.load %arg6[%c0_12, %c0_13] : memref<128x16xbf16, #tpu.memory_space<vmem>>, vector<128x16xbf16>
    %c0_14 = arith.constant 0 : index
    %c0_15 = arith.constant 0 : index
    %18 = vector.load %arg7[%c0_14, %c0_15] : memref<1x16xf32, #tpu.memory_space<vmem>>, vector<1x16xf32>
    %19 = arith.truncf %16 : vector<8x128xf32> to vector<8x128xbf16>
    %cst_16 = arith.constant dense<0.000000e+00> : vector<8x16xf32>
    %20 = tpu.matmul %19, %17, %cst_16 {dimension_numbers = #tpu.dot_dimension_numbers<[1], [0], [0], [1], [0, 0, 1, 1], [], []>} : vector<8x128xbf16>, vector<128x16xbf16>, vector<8x16xf32> -> vector<8x16xf32>
    %21 = vector.broadcast %18 : vector<1x16xf32> to vector<8x16xf32>
    %22 = arith.addf %20, %21 : vector<8x16xf32>
    %cst_17 = arith.constant 0.000000e+00 : f32
    %23 = vector.broadcast %cst_17 : f32 to vector<8x16xf32>
    %24 = arith.maximumf %22, %23 : vector<8x16xf32>
    %c0_18 = arith.constant 0 : index
    %c0_19 = arith.constant 0 : index
    %25 = vector.load %arg8[%c0_18, %c0_19] : memref<8x16xf32, #tpu.memory_space<vmem>>, vector<8x16xf32>
    tpu.vector_store %arg8[%c0_18, %c0_19], %24 {strides = array<i32>} : memref<8x16xf32, #tpu.memory_space<vmem>>, vector<8x16xf32>,
    return
  }
  func.func @transform_0(%arg0: i32) -> (i32, i32) {
    %c0_i32 = arith.constant 0 : i32
    %c0_i32_0 = arith.constant 0 : i32
    return %arg0, %c0_i32 : i32, i32
  }
  func.func @transform_1(%arg0: i32) -> (i32, i32) {
    %c0_i32 = arith.constant 0 : i32
    %c0_i32_0 = arith.constant 0 : i32
    %c0_i32_1 = arith.constant 0 : i32
    return %c0_i32, %c0_i32_0 : i32, i32
  }
  func.func @transform_2(%arg0: i32) -> (i32, i32) {
    %c0_i32 = arith.constant 0 : i32
    %c0_i32_0 = arith.constant 0 : i32
    %c0_i32_1 = arith.constant 0 : i32
    return %c0_i32, %c0_i32_0 : i32, i32
  }
  func.func @transform_3(%arg0: i32) -> (i32, i32) {
    %c0_i32 = arith.constant 0 : i32
    %c0_i32_0 = arith.constant 0 : i32
    %c0_i32_1 = arith.constant 0 : i32
    return %c0_i32, %c0_i32_0 : i32, i32
  }
  func.func @transform_4(%arg0: i32) -> (i32, i32) {
    %c0_i32 = arith.constant 0 : i32
    %c0_i32_0 = arith.constant 0 : i32
    %c0_i32_1 = arith.constant 0 : i32
    return %c0_i32, %c0_i32_0 : i32, i32
  }
  func.func @transform_5(%arg0: i32) -> (i32, i32) {
    %c0_i32 = arith.constant 0 : i32
    %c0_i32_0 = arith.constant 0 : i32
    %c0_i32_1 = arith.constant 0 : i32
    return %c0_i32, %c0_i32_0 : i32, i32
  }
  func.func @transform_6(%arg0: i32) -> (i32, i32) {
    %c0_i32 = arith.constant 0 : i32
    %c0_i32_0 = arith.constant 0 : i32
    %c0_i32_1 = arith.constant 0 : i32
    return %c0_i32, %c0_i32_0 : i32, i32
  }
  func.func @transform_7(%arg0: i32) -> (i32, i32) {
    %c0_i32 = arith.constant 0 : i32
    %c0_i32_0 = arith.constant 0 : i32
    return %arg0, %c0_i32 : i32, i32
  }
}

</mosaic_0001>

<llo_original>
// kernel: tpu_custom_call.1
$region0: #{tpu_custom_call.1}
  #allocation0 [shape = 'u32[]', space=smem, size = 0x4, offset = 0x4, fixed_abs, tag = 'smem constant byte address 0x4 - core index']
  #allocation1 [shape = 'u32[144,128]{1,0:T(1,128)}', space=vmem, size = 0x12000, scoped, tag = 'internal scratch']
  %s0 = inlined_call_operand.vmem [shape: f32[8,32], index: 0, kind: input, shape index: {}]
  %s1 = inlined_call_operand.hbm [shape: bf16[32,128], index: 1, kind: input, shape index: {}]
  %s2 = inlined_call_operand.vmem [shape: f32[1,128], index: 2, kind: input, shape index: {}]
  %s3 = inlined_call_operand.vmem [shape: bf16[128,128], index: 3, kind: input, shape index: {}]
  %s4 = inlined_call_operand.hbm [shape: f32[1,128], index: 4, kind: input, shape index: {}]
  %s5 = inlined_call_operand.vmem [shape: bf16[128,16], index: 5, kind: input, shape index: {}]
  %s6 = inlined_call_operand.vmem [shape: f32[1,16], index: 6, kind: input, shape index: {}]
  %s7 = inlined_call_operand.hbm [shape: f32[8,16], index: 7, kind: output, shape index: {}]
  %s8 = sld [smem:[#allocation0]]
  $region46: #{tpu_custom_call.1} parent=0
    _
  %s10 = ssub.s32 1, %s8
  %s11 = scalar_select 0, %s10, %s8
  $region1: #{tpu_custom_call.1} parent=0
    #allocation2 [shape = 'u8[8192]{0}', space=vmem, size = 0x2000, scoped, tag = 'input window, operand 1, single buffered']
    #allocation3 [shape = 's32[1]{0}', space=sflag, size = 0x4, scoped, tag = 'scoped memory for tpu_custom_call.1']
    #allocation4 [shape = 's32[1]{0}', space=sflag, size = 0x4, scoped, tag = 'scoped memory for tpu_custom_call.1']
    #allocation5 [shape = 'u8[512]{0}', space=vmem, size = 0x400, scoped, tag = 'input window, operand 4, single buffered']
    #allocation6 [shape = 's32[1]{0}', space=sflag, size = 0x4, scoped, tag = 'scoped memory for tpu_custom_call.1']
    #allocation7 [shape = 'u8[4096]{0}', space=vmem, size = 0x1000, scoped, tag = 'output window, operand 0, single buffered']
    %12 = vsyncpa [#allocation3], 0
    %13 = vsyncpa [#allocation6], 0
    %14 = vsyncpa [#allocation4], 0
    // Predicated region
    $region2: #{tpu_custom_call.1} parent=1 // pred_check
      _
    $region3: #{tpu_custom_call.1} parent=1 // pred_check_branch
      %16 = sbr.rel (0) target = $region5
    $region4: #{tpu_custom_call.1} parent=1 // pred_region
      _
    $region5: #{tpu_custom_call.1} parent=1 // pred_fallthru
      _
    // Predicated region
    $region6: #{tpu_custom_call.1} parent=1 // pred_check
      _
    $region7: #{tpu_custom_call.1} parent=1 // pred_check_branch
      %18 = sbr.rel (0) target = $region9
    $region8: #{tpu_custom_call.1} parent=1 // pred_region
      %s20 = ssub.s32 256, 256
      %21 = vsyncadd [#allocation3], %s20
      %s22 = sshll.u32 [#allocation2], 4
      %s23 = int_to_ptr.vmem [resolvable:$true] %s22
      %28 = dma.hbm_to_vmem [thread:$0]  %s1, 256, %s23, [#allocation3], 64, 64, 4
    $region9: #{tpu_custom_call.1} parent=1 // pred_fallthru
      _
    // Predicated region
    $region10: #{tpu_custom_call.1} parent=1 // pred_check
      _
    $region11: #{tpu_custom_call.1} parent=1 // pred_check_branch
      %30 = sbr.rel (0) target = $region13
    $region12: #{tpu_custom_call.1} parent=1 // pred_region
      _
    $region13: #{tpu_custom_call.1} parent=1 // pred_fallthru
      _
    // Predicated region
    $region14: #{tpu_custom_call.1} parent=1 // pred_check
      _
    $region15: #{tpu_custom_call.1} parent=1 // pred_check_branch
      %32 = sbr.rel (0) target = $region17
    $region16: #{tpu_custom_call.1} parent=1 // pred_region
      _
    $region17: #{tpu_custom_call.1} parent=1 // pred_fallthru
      _
    // Predicated region
    $region18: #{tpu_custom_call.1} parent=1 // pred_check
      _
    $region19: #{tpu_custom_call.1} parent=1 // pred_check_branch
      %34 = sbr.rel (0) target = $region21
    $region20: #{tpu_custom_call.1} parent=1 // pred_region
      %s36 = ssub.s32 16, 16
      %37 = vsyncadd [#allocation6], %s36
      %s39 = sshll.u32 [#allocation5], 4
      %s40 = int_to_ptr.vmem [resolvable:$true] %s39
      %42 = dma.hbm_to_vmem [thread:$0]  %s4, 16, %s40, [#allocation6]
    $region21: #{tpu_custom_call.1} parent=1 // pred_fallthru
      _
    // Predicated region
    $region22: #{tpu_custom_call.1} parent=1 // pred_check
      _
    $region23: #{tpu_custom_call.1} parent=1 // pred_check_branch
      %44 = sbr.rel (0) target = $region25
    $region24: #{tpu_custom_call.1} parent=1 // pred_region
      _
    $region25: #{tpu_custom_call.1} parent=1 // pred_fallthru
      _
    // Predicated region
    $region26: #{tpu_custom_call.1} parent=1 // pred_check
      _
    $region27: #{tpu_custom_call.1} parent=1 // pred_check_branch
      %46 = sbr.rel (0) target = $region29
    $region28: #{tpu_custom_call.1} parent=1 // pred_region
      _
    $region29: #{tpu_custom_call.1} parent=1 // pred_fallthru
      _
    // Predicated region
    $region30: #{tpu_custom_call.1} parent=1 // pred_check
      _
    $region31: #{tpu_custom_call.1} parent=1 // pred_check_branch
      %48 = sbr.rel (0) target = $region33
    $region32: #{tpu_custom_call.1} parent=1 // pred_region
      %49 = dma.done [#allocation3], 256
    $region33: #{tpu_custom_call.1} parent=1 // pred_fallthru
      _
    // Predicated region
    $region34: #{tpu_custom_call.1} parent=1 // pred_check
      _
    $region35: #{tpu_custom_call.1} parent=1 // pred_check_branch
      %51 = sbr.rel (0) target = $region37
    $region36: #{tpu_custom_call.1} parent=1 // pred_region
      %52 = dma.done [#allocation6], 16
    $region37: #{tpu_custom_call.1} parent=1 // pred_fallthru
      _
    %v54 = vld [vmem:[%s0] sm:$0xff]
    %v55 = vld [vmem:[#allocation2] sm:$0xf]
    %v56 = vld [vmem:[#allocation2 + $0x4] sm:$0xf]
    %v57 = vld [vmem:[#allocation2 + $0x8] sm:$0xf]
    %v58 = vld [vmem:[#allocation2 + $0xc] sm:$0xf]
    %v59 = vld [vmem:[%s2] sm:$0x1]
    %v60 = vpack.c.bf16 %v54, %v54
    %v62 = vlaneseq
    %v63 = vshrl.u32 %v62, 7
    %v64 = vsub.s32 0, %v63
    %v65 = vrot.slane %v59, %v64
    %v71 = vunpack.c.l.b16 %v55
    %v72 = vunpack.c.l.b16 %v56
    %v73 = vunpack.c.l.b16 %v57
    %v74 = vunpack.c.l.b16 %v58
    %v75 = vpack.c.b16 %v72, %v71
    %v76 = vpack.c.b16 %v74, %v73
    %vm79 = vcmask 261120
    %v81 = vsel %vm79, %v60, 0
    %83 = vmatprep.subr.bf16.mxu0 0
    %84 = vmatpush1.bf16.msra.mxu0 0
    %85 = vmatprep.subr.bf16.mxu0 0
    %86 = vmatpush1.bf16.msra.mxu0 0
    %87 = vmatprep.subr.bf16.mxu0 0
    %88 = vmatpush1.bf16.msra.mxu0 0
    %89 = vmatprep.subr.bf16.mxu0 0
    %90 = vmatpush1.bf16.msra.mxu0 0
    %91 = vmatprep.subr.bf16.mxu0 0
    %92 = vmatpush1.bf16.msra.mxu0 0
    %93 = vmatprep.subr.bf16.mxu0 0
    %94 = vmatpush1.bf16.msra.mxu0 0
    %95 = vmatprep.subr.bf16.mxu0 0
    %96 = vmatpush1.bf16.msra.mxu0 %v76
    %97 = vmatprep.subr.bf16.mxu0 0
    %98 = vmatpush1.bf16.msra.mxu0 %v75
    %99 = vmatprep.subr.bf16.mxu0 0
    %100 = vmatpush2.bf16.msra.mxu0 0
    %101 = vmatprep.subr.bf16.mxu0 0
    %102 = vmatpush2.bf16.msra.mxu0 0
    %103 = vmatprep.subr.bf16.mxu0 0
    %104 = vmatpush2.bf16.msra.mxu0 0
    %105 = vmatprep.subr.bf16.mxu0 0
    %106 = vmatpush2.bf16.msra.mxu0 0
    %107 = vmatprep.subr.bf16.mxu0 0
    %108 = vmatpush2.bf16.msra.mxu0 0
    %109 = vmatprep.subr.bf16.mxu0 0
    %110 = vmatpush2.bf16.msra.mxu0 0
    %111 = vmatprep.subr.bf16.mxu0 0
    %112 = vmatpush2.bf16.msra.mxu0 0
    %113 = vmatprep.subr.bf16.mxu0 0
    %114 = vmatpush2.bf16.msra.mxu0 0
    %115 = vmatprep.mubr.bf16.mxu0 0
    %116 = vmatmul.mubr.bf16.gmra.mxu0 %v81
    %v117 = vpop.f32.mrf.mxu0
    %v118 = vadd.f32 %v65, %v117
    %v119 = vpop.f32.mrf.mxu0
    %v120 = vpop.f32.mrf.mxu0
    %v121 = vpop.f32.mrf.mxu0
    %122 = vdwg.mxu0
    %v123 = vmax.f32 %v118, 0.0
    %v124 = vld [vmem:[%s3] sm:$0xf]
    %v125 = vld [vmem:[%s3 + $0x4] sm:$0xf]
    %v126 = vld [vmem:[%s3 + $0x8] sm:$0xf]
    %v127 = vld [vmem:[%s3 + $0xc] sm:$0xf]
    %v128 = vld [vmem:[%s3 + $0x10] sm:$0xf]
    %v129 = vld [vmem:[%s3 + $0x14] sm:$0xf]
    %v130 = vld [vmem:[%s3 + $0x18] sm:$0xf]
    %v131 = vld [vmem:[%s3 + $0x1c] sm:$0xf]
    %v132 = vld [vmem:[%s3 + $0x20] sm:$0xf]
    %v133 = vld [vmem:[%s3 + $0x24] sm:$0xf]
    %v134 = vld [vmem:[%s3 + $0x28] sm:$0xf]
    %v135 = vld [vmem:[%s3 + $0x2c] sm:$0xf]
    %v136 = vld [vmem:[%s3 + $0x30] sm:$0xf]
    %v137 = vld [vmem:[%s3 + $0x34] sm:$0xf]
    %v138 = vld [vmem:[%s3 + $0x38] sm:$0xf]
    %v139 = vld [vmem:[%s3 + $0x3c] sm:$0xf]
    %v140 = vld [vmem:[#allocation5] sm:$0x1]
    %v141 = vpack.c.bf16 %v123, %v123
    %v143 = vlaneseq
    %v144 = vshrl.u32 %v143, 7
    %v145 = vsub.s32 0, %v144
    %v146 = vrot.slane %v140, %v145
    %v164 = vunpack.c.l.b16 %v124
    %v165 = vunpack.c.l.b16 %v125
    %v166 = vunpack.c.l.b16 %v126
    %v167 = vunpack.c.l.b16 %v127
    %v168 = vunpack.c.l.b16 %v128
    %v169 = vunpack.c.l.b16 %v129
    %v170 = vunpack.c.l.b16 %v130
    %v171 = vunpack.c.l.b16 %v131
    %v172 = vunpack.c.l.b16 %v132
    %v173 = vunpack.c.l.b16 %v133
    %v174 = vunpack.c.l.b16 %v134
    %v175 = vunpack.c.l.b16 %v135
    %v176 = vunpack.c.l.b16 %v136
    %v177 = vunpack.c.l.b16 %v137
    %v178 = vunpack.c.l.b16 %v138
    %v179 = vunpack.c.l.b16 %v139
    %v180 = vpack.c.b16 %v165, %v164
    %v181 = vpack.c.b16 %v167, %v166
    %v182 = vpack.c.b16 %v169, %v168
    %v183 = vpack.c.b16 %v171, %v170
    %v184 = vpack.c.b16 %v173, %v172
    %v185 = vpack.c.b16 %v175, %v174
    %v186 = vpack.c.b16 %v177, %v176
    %v187 = vpack.c.b16 %v179, %v178
    %196 = vmatprep.subr.bf16.mxu0 0
    %197 = vmatpush1.bf16.msra.mxu0 %v187
    %198 = vmatprep.subr.bf16.mxu0 0
    %199 = vmatpush1.bf16.msra.mxu0 %v186
    %200 = vmatprep.subr.bf16.mxu0 0
    %201 = vmatpush1.bf16.msra.mxu0 %v185
    %202 = vmatprep.subr.bf16.mxu0 0
    %203 = vmatpush1.bf16.msra.mxu0 %v184
    %204 = vmatprep.subr.bf16.mxu0 0
    %205 = vmatpush1.bf16.msra.mxu0 %v183
    %206 = vmatprep.subr.bf16.mxu0 0
    %207 = vmatpush1.bf16.msra.mxu0 %v182
    %208 = vmatprep.subr.bf16.mxu0 0
    %209 = vmatpush1.bf16.msra.mxu0 %v181
    %210 = vmatprep.subr.bf16.mxu0 0
    %211 = vmatpush1.bf16.msra.mxu0 %v180
    %212 = vmatprep.subr.bf16.mxu0 0
    %213 = vmatpush2.bf16.msra.mxu0 0
    %214 = vmatprep.subr.bf16.mxu0 0
    %215 = vmatpush2.bf16.msra.mxu0 0
    %216 = vmatprep.subr.bf16.mxu0 0
    %217 = vmatpush2.bf16.msra.mxu0 0
    %218 = vmatprep.subr.bf16.mxu0 0
    %219 = vmatpush2.bf16.msra.mxu0 0
    %220 = vmatprep.subr.bf16.mxu0 0
    %221 = vmatpush2.bf16.msra.mxu0 0
    %222 = vmatprep.subr.bf16.mxu0 0
    %223 = vmatpush2.bf16.msra.mxu0 0
    %224 = vmatprep.subr.bf16.mxu0 0
    %225 = vmatpush2.bf16.msra.mxu0 0
    %226 = vmatprep.subr.bf16.mxu0 0
    %227 = vmatpush2.bf16.msra.mxu0 0
    %228 = vmatprep.mubr.bf16.mxu0 0
    %229 = vmatmul.mubr.bf16.gmra.mxu0 %v141
    %v230 = vpop.f32.mrf.mxu0
    %v231 = vadd.f32 %v146, %v230
    %v232 = vpop.f32.mrf.mxu0
    %v233 = vpop.f32.mrf.mxu0
    %v234 = vpop.f32.mrf.mxu0
    %235 = vdwg.mxu0
    %v236 = vmax.f32 %v231, 0.0
    %v237 = vld [vmem:[%s5] sm:$0xf]
    %v238 = vld [vmem:[%s5 + $0x4] sm:$0xf]
    %v239 = vld [vmem:[%s5 + $0x8] sm:$0xf]
    %v240 = vld [vmem:[%s5 + $0xc] sm:$0xf]
    %v241 = vld [vmem:[%s5 + $0x10] sm:$0xf]
    %v242 = vld [vmem:[%s5 + $0x14] sm:$0xf]
    %v243 = vld [vmem:[%s5 + $0x18] sm:$0xf]
    %v244 = vld [vmem:[%s5 + $0x1c] sm:$0xf]
    %v245 = vld [vmem:[%s5 + $0x20] sm:$0xf]
    %v246 = vld [vmem:[%s5 + $0x24] sm:$0xf]
    %v247 = vld [vmem:[%s5 + $0x28] sm:$0xf]
    %v248 = vld [vmem:[%s5 + $0x2c] sm:$0xf]
    %v249 = vld [vmem:[%s5 + $0x30] sm:$0xf]
    %v250 = vld [vmem:[%s5 + $0x34] sm:$0xf]
    %v251 = vld [vmem:[%s5 + $0x38] sm:$0xf]
    %v252 = vld [vmem:[%s5 + $0x3c] sm:$0xf]
    %v253 = vld [vmem:[%s6] sm:$0x1]
    %v254 = vpack.c.bf16 %v236, %v236
    %v256 = vlaneseq
    %v257 = vshrl.u32 %v256, 7
    %v258 = vsub.s32 0, %v257
    %v259 = vrot.slane %v253, %v258
    %v277 = vunpack.c.l.b16 %v237
    %v278 = vunpack.c.l.b16 %v238
    %v279 = vunpack.c.l.b16 %v239
    %v280 = vunpack.c.l.b16 %v240
    %v281 = vunpack.c.l.b16 %v241
    %v282 = vunpack.c.l.b16 %v242
    %v283 = vunpack.c.l.b16 %v243
    %v284 = vunpack.c.l.b16 %v244
    %v285 = vunpack.c.l.b16 %v245
    %v286 = vunpack.c.l.b16 %v246
    %v287 = vunpack.c.l.b16 %v247
    %v288 = vunpack.c.l.b16 %v248
    %v289 = vunpack.c.l.b16 %v249
    %v290 = vunpack.c.l.b16 %v250
    %v291 = vunpack.c.l.b16 %v251
    %v292 = vunpack.c.l.b16 %v252
    %v293 = vpack.c.b16 %v278, %v277
    %v294 = vpack.c.b16 %v280, %v279
    %v295 = vpack.c.b16 %v282, %v281
    %v296 = vpack.c.b16 %v284, %v283
    %v297 = vpack.c.b16 %v286, %v285
    %v298 = vpack.c.b16 %v288, %v287
    %v299 = vpack.c.b16 %v290, %v289
    %v300 = vpack.c.b16 %v292, %v291
    %309 = vmatprep.subr.bf16.mxu0 0
    %310 = vmatpush1.bf16.msra.mxu0 %v300
    %311 = vmatprep.subr.bf16.mxu0 0
    %312 = vmatpush1.bf16.msra.mxu0 %v299
    %313 = vmatprep.subr.bf16.mxu0 0
    %314 = vmatpush1.bf16.msra.mxu0 %v298
    %315 = vmatprep.subr.bf16.mxu0 0
    %316 = vmatpush1.bf16.msra.mxu0 %v297
    %317 = vmatprep.subr.bf16.mxu0 0
    %318 = vmatpush1.bf16.msra.mxu0 %v296
    %319 = vmatprep.subr.bf16.mxu0 0
    %320 = vmatpush1.bf16.msra.mxu0 %v295
    %321 = vmatprep.subr.bf16.mxu0 0
    %322 = vmatpush1.bf16.msra.mxu0 %v294
    %323 = vmatprep.subr.bf16.mxu0 0
    %324 = vmatpush1.bf16.msra.mxu0 %v293
    %325 = vmatprep.subr.bf16.mxu0 0
    %326 = vmatpush2.bf16.msra.mxu0 0
    %327 = vmatprep.subr.bf16.mxu0 0
    %328 = vmatpush2.bf16.msra.mxu0 0
    %329 = vmatprep.subr.bf16.mxu0 0
    %330 = vmatpush2.bf16.msra.mxu0 0
    %331 = vmatprep.subr.bf16.mxu0 0
    %332 = vmatpush2.bf16.msra.mxu0 0
    %333 = vmatprep.subr.bf16.mxu0 0
    %334 = vmatpush2.bf16.msra.mxu0 0
    %335 = vmatprep.subr.bf16.mxu0 0
    %336 = vmatpush2.bf16.msra.mxu0 0
    %337 = vmatprep.subr.bf16.mxu0 0
    %338 = vmatpush2.bf16.msra.mxu0 0
    %339 = vmatprep.subr.bf16.mxu0 0
    %340 = vmatpush2.bf16.msra.mxu0 0
    %341 = vmatprep.mubr.bf16.mxu0 0
    %342 = vmatmul.mubr.bf16.gmra.mxu0 %v254
    %v343 = vpop.f32.mrf.mxu0
    %v344 = vadd.f32 %v259, %v343
    %v345 = vpop.f32.mrf.mxu0
    %v346 = vpop.f32.mrf.mxu0
    %v347 = vpop.f32.mrf.mxu0
    %348 = vdwg.mxu0
    %v349 = vmax.f32 %v344, 0.0
    %vm350 = vcmask 130048
    %351 = vst.msk [vmem:[#allocation7] sm:$0xff] %vm350, %v349
    // Predicated region
    $region38: #{tpu_custom_call.1} parent=1 // pred_check
      _
    $region39: #{tpu_custom_call.1} parent=1 // pred_check_branch
      %353 = sbr.rel (0) target = $region41
    $region40: #{tpu_custom_call.1} parent=1 // pred_region
      %s355 = ssub.s32 128, 128
      %356 = vsyncadd [#allocation4], %s355
      %s358 = sshll.u32 [#allocation7], 4
      %s359 = int_to_ptr.vmem [resolvable:$true] %s358
      %361 = dma.vmem_to_hbm [thread:$0]  %s359, 128, %s7, [#allocation4]
    $region41: #{tpu_custom_call.1} parent=1 // pred_fallthru
      _
    // Predicated region
    $region42: #{tpu_custom_call.1} parent=1 // pred_check
      _
    $region43: #{tpu_custom_call.1} parent=1 // pred_check_branch
      %363 = sbr.rel (0) target = $region45
    $region44: #{tpu_custom_call.1} parent=1 // pred_region
      %364 = dma.done [#allocation4], 128
    $region45: #{tpu_custom_call.1} parent=1 // pred_fallthru
      _
    %365 = vsyncpa [#allocation3], 1
    %366 = vsyncpa [#allocation6], 1
    %367 = vsyncpa [#allocation4], 1

</llo_original>
